<compile_context>
chip_gen: v5e
topology: v5e:2x2
jax: 0.10.0
libtpu: 0.0.40
codegen_flags: <defaults>
</compile_context>

<pallas_src>
import functools

import jax
import jax.numpy as jnp
from jax.experimental import pallas as pl
from jax.experimental.pallas import tpu as pltpu


# ----------------------------- glue helpers -----------------------------

def weight_norm_weight(v, g):
    # PyTorch weight_norm(dim=0) on nn.Linear weight [out, in]:
    #   w[i, :] = g[i] * v[i, :] / ||v[i, :]||_2
    norm = jnp.sqrt(jnp.sum(v * v, axis=1, keepdims=True))
    return g * v / norm


def _round_up(x, m):
    return (x + m - 1) // m * m


def _pick_tile(dim, candidates):
    for c in candidates:
        if dim % c == 0:
            return c
    return dim          # full extent is always a legal block size


def _pick_chunk(t, max_chunk):
    for c in range(min(t, max_chunk), 0, -1):
        if t % c == 0:
            return c
    return 1


# ----------------------- Pallas kernel 1: tiled linear -----------------------
# out[M, N] = x[M, K] @ w[K, N] + b[1, N], parallel 2-D grid (megacore-friendly).

def _linear_kernel(x_ref, w_ref, b_ref, o_ref):
    o_ref[...] = (jnp.dot(x_ref[...], w_ref[...],
                          preferred_element_type=jnp.float32)
                  + b_ref[...]).astype(o_ref.dtype)


def linear_pallas(x, w, b):
    M, K = x.shape
    N = w.shape[1]
    tm = _pick_tile(M, (512, 256, 128, 64, 32, 16, 8))
    tn = _pick_tile(N, (1024, 512, 256, 128))
    return pl.pallas_call(
        _linear_kernel,
        out_shape=jax.ShapeDtypeStruct((M, N), jnp.float32),
        grid_spec=pltpu.PrefetchScalarGridSpec(
            num_scalar_prefetch=0,
            grid=(M // tm, N // tn),
            in_specs=[
                pl.BlockSpec((tm, K), lambda i, j: (i, 0)),
                pl.BlockSpec((K, tn), lambda i, j: (0, j)),
                pl.BlockSpec((1, tn), lambda i, j: (0, j)),
            ],
            out_specs=pl.BlockSpec((tm, tn), lambda i, j: (i, j)),
        ),
        compiler_params=pltpu.CompilerParams(
            dimension_semantics=("parallel", "parallel")),
    )(x, w, b)


# -------------------- Pallas kernel 2: recurrent LSTM core --------------------
# Per time-chunk: gates = gx[t] (precomputed x @ W_ih^T + biases) + h @ W_hh^T.
# h/c are carried in vregs inside the unrolled chunk and in VMEM scratch across
# chunks.  Output is the hidden state sequence [T, B, Hp] (fc head is hoisted).

def _lstm_recurrent_kernel(gx_ref, whh_ref, h0_ref, c0_ref, hseq_ref,
                           h_sc, c_sc, *, chunk):
    @pl.when(pl.program_id(0) == 0)
    def _():
        h_sc[...] = h0_ref[...]
        c_sc[...] = c0_ref[...]

    hp = h_sc.shape[-1]
    whh = whh_ref[...]                     # [Hp, 4*Hp] (resident, constant index)

    def step(i, carry):
        h, c = carry
        gates = gx_ref[i] + jnp.dot(h.astype(whh.dtype), whh,
                                    preferred_element_type=jnp.float32)
        # lane-aligned gate slices (Hp % 128 == 0), PyTorch gate order i, f, g, o
        i_g = jax.nn.sigmoid(gates[:, 0 * hp:1 * hp])
        f_g = jax.nn.sigmoid(gates[:, 1 * hp:2 * hp])
        g_g = jnp.tanh(gates[:, 2 * hp:3 * hp])
        o_g = jax.nn.sigmoid(gates[:, 3 * hp:4 * hp])
        c_new = f_g * c + i_g * g_g
        h_new = o_g * jnp.tanh(c_new)
        hseq_ref[i] = h_new                # full (8,128)-aligned tile store
        return (h_new, c_new)

    h_fin, c_fin = jax.lax.fori_loop(0, chunk, step,
                                     (h_sc[...], c_sc[...]), unroll=True)
    h_sc[...] = h_fin
    c_sc[...] = c_fin


# ----------------------------- forward wrapper -----------------------------

def lstm_decoder_forward(img_feat, cap, params, *, use_bf16=True, time_chunk=8):
    B, T = cap.shape
    E = params["embed"].shape[1]
    H = params["init_h_v"].shape[0]
    V = params["fc_v"].shape[0]

    Bp = _round_up(max(B, 8), 8)           # sublane-aligned batch
    Hp = _round_up(H, 128)                 # lane-aligned hidden dim
    cdt = jnp.bfloat16 if use_bf16 else jnp.float32   # matmul-input dtype

    # ---- fold weight_norm, transpose to [in, out], pad to aligned H ----
    wh = weight_norm_weight(params["init_h_v"], params["init_h_g"]).T    # [D, H]
    wc = weight_norm_weight(params["init_c_v"], params["init_c_g"]).T    # [D, H]
    wfc = weight_norm_weight(params["fc_v"], params["fc_g"]).T           # [H, V]
    wfc_p = jnp.pad(wfc, ((0, Hp - H), (0, 0)))                          # [Hp, V]
    bfc = params["fc_b"][None, :]                                        # [1, V]

    def pad_gates(w_4h, axis):
        # pad each of the 4 gate blocks from H to Hp (zeros) along `axis`
        parts = jnp.split(w_4h, 4, axis=axis)
        pad_width = [(0, 0)] * w_4h.ndim
        pad_width[axis] = (0, Hp - H)
        return jnp.concatenate([jnp.pad(p, pad_width) for p in parts], axis=axis)

    wih_p = pad_gates(params["w_ih"].T, axis=1)                          # [E, 4Hp]
    whh_p = pad_gates(jnp.pad(params["w_hh"].T, ((0, Hp - H), (0, 0))),
                      axis=1)                                            # [Hp, 4Hp]
    bg_p = pad_gates((params["b_ih"] + params["b_hh"])[None, :], axis=1)  # [1, 4Hp]

    # ---- init_h / init_c: one-shot matmuls, plain JAX (hoisted out of kernel) ----
    img_p = jnp.pad(img_feat, ((0, Bp - B), (0, 0)))
    h0 = jnp.pad(img_p @ wh + params["init_h_b"][None, :], ((0, 0), (0, Hp - H)))
    c0 = jnp.pad(img_p @ wc + params["init_c_b"][None, :], ((0, 0), (0, Hp - H)))

    # ---- embedding gather + hoisted input-gate projection over all timesteps ----
    emb = params["embed"][cap]                                # [B, T, E] (glue)
    emb_t = jnp.pad(jnp.transpose(emb, (1, 0, 2)),
                    ((0, 0), (0, Bp - B), (0, 0)))            # [T, Bp, E]
    gx = linear_pallas(emb_t.reshape(T * Bp, E).astype(cdt),
                       wih_p.astype(cdt), bg_p)               # [T*Bp, 4Hp] f32
    gx = gx.reshape(T, Bp, 4 * Hp)

    # ---- recurrent core: grid over time chunks, unrolled inside ----
    ct = _pick_chunk(T, time_chunk)
    hseq = pl.pallas_call(
        functools.partial(_lstm_recurrent_kernel, chunk=ct),
        out_shape=jax.ShapeDtypeStruct((T, Bp, Hp), jnp.float32),
        grid_spec=pltpu.PrefetchScalarGridSpec(
            num_scalar_prefetch=0,
            grid=(T // ct,),
            in_specs=[
                pl.BlockSpec((ct, Bp, 4 * Hp), lambda n: (n, 0, 0)),  # gx chunk
                pl.BlockSpec((Hp, 4 * Hp), lambda n: (0, 0)),         # W_hh^T
                pl.BlockSpec((Bp, Hp), lambda n: (0, 0)),             # h0
                pl.BlockSpec((Bp, Hp), lambda n: (0, 0)),             # c0
            ],
            out_specs=pl.BlockSpec((ct, Bp, Hp), lambda n: (n, 0, 0)),
            scratch_shapes=[pltpu.VMEM((Bp, Hp), jnp.float32),        # h carry
                            pltpu.VMEM((Bp, Hp), jnp.float32)],       # c carry
        ),
        # Must stay "arbitrary": h/c scratch is a cross-step carry.
        compiler_params=pltpu.CompilerParams(
            dimension_semantics=("arbitrary",)),
    )(gx, whh_p.astype(cdt), h0, c0)

    # ---- hoisted vocab projection (fc head), batch-major -> no [T,B,V] transpose ----
    # Only the small [T,B,H] hidden-state tensor is transposed (V/H times cheaper).
    h_bt = jnp.transpose(hseq, (1, 0, 2)).reshape(Bp * T, Hp)
    logits = linear_pallas(h_bt.astype(cdt), wfc_p.astype(cdt), bfc)   # [Bp*T, V]
    return logits.reshape(Bp, T, V)[:B]                                # [B, T, V]


# ----------------------------- pure-JAX reference -----------------------------

def reference_forward(img_feat, cap, p):
    wh = weight_norm_weight(p["init_h_v"], p["init_h_g"])
    wc = weight_norm_weight(p["init_c_v"], p["init_c_g"])
    wfc = weight_norm_weight(p["fc_v"], p["fc_g"])
    h = img_feat @ wh.T + p["init_h_b"]
    c = img_feat @ wc.T + p["init_c_b"]
    emb = jnp.transpose(p["embed"][cap], (1, 0, 2))   # [T, B, E]
    H = h.shape[-1]

    def step(carry, x_t):
        h, c = carry
        gates = x_t @ p["w_ih"].T + p["b_ih"] + h @ p["w_hh"].T + p["b_hh"]
        i_g = jax.nn.sigmoid(gates[:, 0 * H:1 * H])
        f_g = jax.nn.sigmoid(gates[:, 1 * H:2 * H])
        g_g = jnp.tanh(gates[:, 2 * H:3 * H])
        o_g = jax.nn.sigmoid(gates[:, 3 * H:4 * H])
        c_new = f_g * c + i_g * g_g
        h_new = o_g * jnp.tanh(c_new)
        logit = h_new @ wfc.T + p["fc_b"]
        return (h_new, c_new), logit

    _, logits = jax.lax.scan(step, (h, c), emb)
    return jnp.transpose(logits, (1, 0, 2))


# ----------------------------- main -----------------------------

if __name__ == "__main__":
    # Small, module-consistent shapes.
    B, T = 4, 8
    IMAGE_DIM, EMBED_DIM, HIDDEN_DIM, VOCAB = 64, 32, 32, 128

    key = jax.random.PRNGKey(0)
    ks = jax.random.split(key, 16)
    u = lambda k, shape, s=0.1: jax.random.uniform(k, shape, jnp.float32, -s, s)

    params = {
        # nn.Embedding(vocab, embed_dim), init uniform(-0.1, 0.1)
        "embed": u(ks[0], (VOCAB, EMBED_DIM)),
        # weight_norm(nn.Linear(image_dim, hidden_dim)) x 2
        "init_h_v": u(ks[1], (HIDDEN_DIM, IMAGE_DIM), 0.3),
        "init_h_g": jax.random.uniform(ks[2], (HIDDEN_DIM, 1), jnp.float32, 0.5, 1.5),
        "init_h_b": u(ks[3], (HIDDEN_DIM,)),
        "init_c_v": u(ks[4], (HIDDEN_DIM, IMAGE_DIM), 0.3),
        "init_c_g": jax.random.uniform(ks[5], (HIDDEN_DIM, 1), jnp.float32, 0.5, 1.5),
        "init_c_b": u(ks[6], (HIDDEN_DIM,)),
        # nn.LSTMCell(embed_dim, hidden_dim): gate order i, f, g, o
        "w_ih": u(ks[7], (4 * HIDDEN_DIM, EMBED_DIM), 0.2),
        "w_hh": u(ks[8], (4 * HIDDEN_DIM, HIDDEN_DIM), 0.2),
        "b_ih": u(ks[9], (4 * HIDDEN_DIM,), 0.2),
        "b_hh": u(ks[10], (4 * HIDDEN_DIM,), 0.2),
        # weight_norm(nn.Linear(hidden_dim, vocab)), fc.bias = 0, weight uniform
        "fc_v": u(ks[11], (VOCAB, HIDDEN_DIM)),
        "fc_g": jax.random.uniform(ks[12], (VOCAB, 1), jnp.float32, 0.5, 1.5),
        "fc_b": jnp.zeros((VOCAB,), jnp.float32),
    }

    img_feat = jax.random.normal(ks[13], (B, IMAGE_DIM), jnp.float32)
    cap = jax.random.randint(ks[14], (B, T), 0, VOCAB, jnp.int32)
    cap_len = jnp.full((B,), T, jnp.int32)   # forward loops over max(cap_len) == T

    ref = jax.block_until_ready(reference_forward(img_feat, cap, params))

    # Exact-semantics (f32) run — tight tolerance against the f32 reference.
    out_f32 = jax.block_until_ready(
        lstm_decoder_forward(img_feat, cap, params, use_bf16=False))
    assert out_f32.shape == (B, T, VOCAB), out_f32.shape
    assert jnp.allclose(out_f32, ref, atol=2e-4, rtol=2e-4), (
        float(jnp.max(jnp.abs(out_f32 - ref))))

    # Optimized (bf16 matmul inputs, f32 accumulate/carries) run — loose tolerance.
    out_bf16 = jax.block_until_ready(
        lstm_decoder_forward(img_feat, cap, params, use_bf16=True))
    assert out_bf16.shape == (B, T, VOCAB), out_bf16.shape
    assert jnp.allclose(out_bf16, ref, atol=3e-2, rtol=3e-2), (
        float(jnp.max(jnp.abs(out_bf16 - ref))))

    print("KERNEL_OK")
</pallas_src>

<mosaic_0001>
module attributes {stable_mosaic.version = 11 : i64} {
  func.func @_linear_kernel(%arg0: i32, %arg1: i32, %arg2: memref<64x32xf32, #tpu.memory_space<vmem>>, %arg3: memref<32x512xf32, #tpu.memory_space<vmem>>, %arg4: memref<1x512xf32, #tpu.memory_space<vmem>>, %arg5: memref<64x512xf32, #tpu.memory_space<vmem>>) attributes {dimension_semantics = [#tpu.dimension_semantics<parallel>, #tpu.dimension_semantics<parallel>], iteration_bounds = array<i64: 1, 1>, scalar_prefetch = 0 : i64, scratch_operands = 0 : i64, tpu.core_type = #tpu.core_type<tc>, window_params = [{transform_indices = @transform_0, window_bounds = array<i64: 64, 32>}, {transform_indices = @transform_1, window_bounds = array<i64: 32, 512>}, {transform_indices = @transform_2, window_bounds = array<i64: 1, 512>}, {transform_indices = @transform_3, window_bounds = array<i64: 64, 512>}]} {
    %c0 = arith.constant 0 : index
    %c0_0 = arith.constant 0 : index
    %0 = vector.load %arg2[%c0, %c0_0] : memref<64x32xf32, #tpu.memory_space<vmem>>, vector<64x32xf32>
    %c0_1 = arith.constant 0 : index
    %c0_2 = arith.constant 0 : index
    %1 = vector.load %arg3[%c0_1, %c0_2] : memref<32x512xf32, #tpu.memory_space<vmem>>, vector<32x512xf32>
    %cst = arith.constant dense<0.000000e+00> : vector<64x512xf32>
    %2 = tpu.matmul %0, %1, %cst {dimension_numbers = #tpu.dot_dimension_numbers<[1], [0], [0], [1], [0, 0, 1, 1], [], []>} : vector<64x32xf32>, vector<32x512xf32>, vector<64x512xf32> -> vector<64x512xf32>
    %c0_3 = arith.constant 0 : index
    %c0_4 = arith.constant 0 : index
    %3 = vector.load %arg4[%c0_3, %c0_4] : memref<1x512xf32, #tpu.memory_space<vmem>>, vector<1x512xf32>
    %4 = vector.broadcast %3 : vector<1x512xf32> to vector<64x512xf32>
    %5 = arith.addf %2, %4 : vector<64x512xf32>
    %c0_5 = arith.constant 0 : index
    %c0_6 = arith.constant 0 : index
    %6 = vector.load %arg5[%c0_5, %c0_6] : memref<64x512xf32, #tpu.memory_space<vmem>>, vector<64x512xf32>
    tpu.vector_store %arg5[%c0_5, %c0_6], %5 {strides = array<i32>} : memref<64x512xf32, #tpu.memory_space<vmem>>, vector<64x512xf32>,
    return
  }
  func.func @transform_0(%arg0: i32, %arg1: i32) -> (i32, i32) {
    %c0_i32 = arith.constant 0 : i32
    %c0_i32_0 = arith.constant 0 : i32
    return %arg0, %c0_i32 : i32, i32
  }
  func.func @transform_1(%arg0: i32, %arg1: i32) -> (i32, i32) {
    %c0_i32 = arith.constant 0 : i32
    %c0_i32_0 = arith.constant 0 : i32
    return %c0_i32, %arg1 : i32, i32
  }
  func.func @transform_2(%arg0: i32, %arg1: i32) -> (i32, i32) {
    %c0_i32 = arith.constant 0 : i32
    %c0_i32_0 = arith.constant 0 : i32
    return %c0_i32, %arg1 : i32, i32
  }
  func.func @transform_3(%arg0: i32, %arg1: i32) -> (i32, i32) {
    %c0_i32 = arith.constant 0 : i32
    return %arg0, %arg1 : i32, i32
  }
}

</mosaic_0001>

<llo_original>
// kernel: tpu_custom_call.1
$region0: #{tpu_custom_call.1}
  #allocation0 [shape = 'u32[]', space=smem, size = 0x4, offset = 0x4, fixed_abs, tag = 'smem constant byte address 0x4 - core index']
  #allocation1 [shape = 'u32[72,128]{1,0:T(1,128)}', space=vmem, size = 0x9000, scoped, tag = 'internal scratch']
  %s0 = inlined_call_operand.vmem [shape: f32[64,32], index: 0, kind: input, shape index: {}]
  %s1 = inlined_call_operand.hbm [shape: f32[32,512], index: 1, kind: input, shape index: {}]
  %s2 = inlined_call_operand.vmem [shape: f32[1,512], index: 2, kind: input, shape index: {}]
  %s3 = inlined_call_operand.hbm [shape: f32[64,512], index: 3, kind: output, shape index: {}]
  %s4 = sld [smem:[#allocation0]]
  $region26: #{tpu_custom_call.1} parent=0
    _
  %s6 = ssub.s32 1, %s4
  %s7 = scalar_select 0, %s6, %s4
  $region1: #{tpu_custom_call.1} parent=0
    #allocation2 [shape = 'u8[65536]{0}', space=vmem, size = 0x10000, scoped, tag = 'input window, operand 1, single buffered']
    #allocation3 [shape = 's32[1]{0}', space=sflag, size = 0x4, scoped, tag = 'scoped memory for tpu_custom_call.1']
    #allocation4 [shape = 's32[1]{0}', space=sflag, size = 0x4, scoped, tag = 'scoped memory for tpu_custom_call.1']
    #allocation5 [shape = 'u8[131072]{0}', space=vmem, size = 0x20000, scoped, tag = 'output window, operand 0, single buffered']
    %8 = vsyncpa [#allocation3], 0
    %9 = vsyncpa [#allocation4], 0
    // Predicated region
    $region2: #{tpu_custom_call.1} parent=1 // pred_check
      _
    $region3: #{tpu_custom_call.1} parent=1 // pred_check_branch
      %11 = sbr.rel (0) target = $region5
    $region4: #{tpu_custom_call.1} parent=1 // pred_region
      _
    $region5: #{tpu_custom_call.1} parent=1 // pred_fallthru
      _
    // Predicated region
    $region6: #{tpu_custom_call.1} parent=1 // pred_check
      _
    $region7: #{tpu_custom_call.1} parent=1 // pred_check_branch
      %13 = sbr.rel (0) target = $region9
    $region8: #{tpu_custom_call.1} parent=1 // pred_region
      %15 = vsyncadd [#allocation3], 0
      %s16 = sshll.u32 %s1, 4
      %s17 = int_to_ptr.hbm [resolvable:$true] %s16
      %s18 = sshll.u32 [#allocation2], 4
      %s19 = int_to_ptr.vmem [resolvable:$true] %s18
      %24 = dma.hbm_to_vmem [thread:$0]  %s17, 2048, %s19, [#allocation3], 512, 512, 32
    $region9: #{tpu_custom_call.1} parent=1 // pred_fallthru
      _
    // Predicated region
    $region10: #{tpu_custom_call.1} parent=1 // pred_check
      _
    $region11: #{tpu_custom_call.1} parent=1 // pred_check_branch
      %26 = sbr.rel (0) target = $region13
    $region12: #{tpu_custom_call.1} parent=1 // pred_region
      _
    $region13: #{tpu_custom_call.1} parent=1 // pred_fallthru
      _
    // Predicated region
    $region14: #{tpu_custom_call.1} parent=1 // pred_check
      _
    $region15: #{tpu_custom_call.1} parent=1 // pred_check_branch
      %28 = sbr.rel (0) target = $region17
    $region16: #{tpu_custom_call.1} parent=1 // pred_region
      %30 = dma.done [#allocation3], 2048
    $region17: #{tpu_custom_call.1} parent=1 // pred_fallthru
      _
    %v31 = vld [vmem:[%s0] sm:$0xff]
    %v32 = vld [vmem:[%s0 + $0x8] sm:$0xff]
    %v33 = vld [vmem:[%s0 + $0x10] sm:$0xff]
    %v34 = vld [vmem:[%s0 + $0x18] sm:$0xff]
    %v35 = vld [vmem:[%s0 + $0x20] sm:$0xff]
    %v36 = vld [vmem:[%s0 + $0x28] sm:$0xff]
    %v37 = vld [vmem:[%s0 + $0x30] sm:$0xff]
    %v38 = vld [vmem:[%s0 + $0x38] sm:$0xff]
    %v39 = vld [vmem:[#allocation2] sm:$0xff]
    %v40 = vld [vmem:[#allocation2 + $0x8] sm:$0xff]
    %v41 = vld [vmem:[#allocation2 + $0x10] sm:$0xff]
    %v42 = vld [vmem:[#allocation2 + $0x18] sm:$0xff]
    %v43 = vld [vmem:[#allocation2 + $0x20] sm:$0xff]
    %v44 = vld [vmem:[#allocation2 + $0x28] sm:$0xff]
    %v45 = vld [vmem:[#allocation2 + $0x30] sm:$0xff]
    %v46 = vld [vmem:[#allocation2 + $0x38] sm:$0xff]
    %v47 = vld [vmem:[#allocation2 + $0x40] sm:$0xff]
    %v48 = vld [vmem:[#allocation2 + $0x48] sm:$0xff]
    %v49 = vld [vmem:[#allocation2 + $0x50] sm:$0xff]
    %v50 = vld [vmem:[#allocation2 + $0x58] sm:$0xff]
    %v51 = vld [vmem:[#allocation2 + $0x60] sm:$0xff]
    %v52 = vld [vmem:[#allocation2 + $0x68] sm:$0xff]
    %v53 = vld [vmem:[#allocation2 + $0x70] sm:$0xff]
    %v54 = vld [vmem:[#allocation2 + $0x78] sm:$0xff]
    %v55 = vld [vmem:[%s2] sm:$0xf]
    %v57 = vperm.slane %v55, 0
    %v58 = vperm.slane %v55, 1
    %v59 = vperm.slane %v55, 2
    %v60 = vperm.slane %v55, 3
    %vm65 = vcmask 261120
    %v67 = vsel %vm65, %v31, 0
    %v70 = vsel %vm65, %v32, 0
    %v73 = vsel %vm65, %v33, 0
    %v76 = vsel %vm65, %v34, 0
    %v79 = vsel %vm65, %v35, 0
    %v82 = vsel %vm65, %v36, 0
    %v85 = vsel %vm65, %v37, 0
    %v88 = vsel %vm65, %v38, 0
    %90 = vmatpush.msra.mxu0 0.0
    %91 = vmatpush.msra.mxu0 0.0
    %92 = vmatpush.msra.mxu0 0.0
    %93 = vmatpush.msra.mxu0 0.0
    %94 = vmatpush.msra.mxu0 0.0
    %95 = vmatpush.msra.mxu0 0.0
    %96 = vmatpush.msra.mxu0 0.0
    %97 = vmatpush.msra.mxu0 0.0
    %98 = vmatpush.msra.mxu0 0.0
    %99 = vmatpush.msra.mxu0 0.0
    %100 = vmatpush.msra.mxu0 0.0
    %101 = vmatpush.msra.mxu0 0.0
    %102 = vmatpush.msra.mxu0 %v51
    %103 = vmatpush.msra.mxu0 %v47
    %104 = vmatpush.msra.mxu0 %v43
    %105 = vmatpush.msra.mxu0 %v39
    %106 = vmatmul.f32.gmra.mxu0 %v67
    %v107 = vpop.f32.mrf.mxu0
    %v108 = vadd.f32 %v57, %v107
    %109 = vmatmul.f32.gmra.mxu0 %v70
    %v110 = vpop.f32.mrf.mxu0
    %v111 = vadd.f32 %v57, %v110
    %112 = vmatmul.f32.gmra.mxu0 %v73
    %v113 = vpop.f32.mrf.mxu0
    %v114 = vadd.f32 %v57, %v113
    %115 = vmatmul.f32.gmra.mxu0 %v76
    %v116 = vpop.f32.mrf.mxu0
    %v117 = vadd.f32 %v57, %v116
    %118 = vmatmul.f32.gmra.mxu0 %v79
    %v119 = vpop.f32.mrf.mxu0
    %v120 = vadd.f32 %v57, %v119
    %121 = vmatmul.f32.gmra.mxu0 %v82
    %v122 = vpop.f32.mrf.mxu0
    %v123 = vadd.f32 %v57, %v122
    %124 = vmatmul.f32.gmra.mxu0 %v85
    %v125 = vpop.f32.mrf.mxu0
    %v126 = vadd.f32 %v57, %v125
    %127 = vmatmul.f32.gmra.mxu0 %v88
    %v128 = vpop.f32.mrf.mxu0
    %v129 = vadd.f32 %v57, %v128
    %130 = vdwg.mxu0
    %131 = vmatpush.msra.mxu0 0.0
    %132 = vmatpush.msra.mxu0 0.0
    %133 = vmatpush.msra.mxu0 0.0
    %134 = vmatpush.msra.mxu0 0.0
    %135 = vmatpush.msra.mxu0 0.0
    %136 = vmatpush.msra.mxu0 0.0
    %137 = vmatpush.msra.mxu0 0.0
    %138 = vmatpush.msra.mxu0 0.0
    %139 = vmatpush.msra.mxu0 0.0
    %140 = vmatpush.msra.mxu0 0.0
    %141 = vmatpush.msra.mxu0 0.0
    %142 = vmatpush.msra.mxu0 0.0
    %143 = vmatpush.msra.mxu0 %v52
    %144 = vmatpush.msra.mxu0 %v48
    %145 = vmatpush.msra.mxu0 %v44
    %146 = vmatpush.msra.mxu0 %v40
    %147 = vmatmul.f32.gmra.mxu0 %v67
    %v148 = vpop.f32.mrf.mxu0
    %v149 = vadd.f32 %v58, %v148
    %150 = vmatmul.f32.gmra.mxu0 %v70
    %v151 = vpop.f32.mrf.mxu0
    %v152 = vadd.f32 %v58, %v151
    %153 = vmatmul.f32.gmra.mxu0 %v73
    %v154 = vpop.f32.mrf.mxu0
    %v155 = vadd.f32 %v58, %v154
    %156 = vmatmul.f32.gmra.mxu0 %v76
    %v157 = vpop.f32.mrf.mxu0
    %v158 = vadd.f32 %v58, %v157
    %159 = vmatmul.f32.gmra.mxu0 %v79
    %v160 = vpop.f32.mrf.mxu0
    %v161 = vadd.f32 %v58, %v160
    %162 = vmatmul.f32.gmra.mxu0 %v82
    %v163 = vpop.f32.mrf.mxu0
    %v164 = vadd.f32 %v58, %v163
    %165 = vmatmul.f32.gmra.mxu0 %v85
    %v166 = vpop.f32.mrf.mxu0
    %v167 = vadd.f32 %v58, %v166
    %168 = vmatmul.f32.gmra.mxu0 %v88
    %v169 = vpop.f32.mrf.mxu0
    %v170 = vadd.f32 %v58, %v169
    %171 = vdwg.mxu0
    %172 = vmatpush.msra.mxu0 0.0
    %173 = vmatpush.msra.mxu0 0.0
    %174 = vmatpush.msra.mxu0 0.0
    %175 = vmatpush.msra.mxu0 0.0
    %176 = vmatpush.msra.mxu0 0.0
    %177 = vmatpush.msra.mxu0 0.0
    %178 = vmatpush.msra.mxu0 0.0
    %179 = vmatpush.msra.mxu0 0.0
    %180 = vmatpush.msra.mxu0 0.0
    %181 = vmatpush.msra.mxu0 0.0
    %182 = vmatpush.msra.mxu0 0.0
    %183 = vmatpush.msra.mxu0 0.0
    %184 = vmatpush.msra.mxu0 %v53
    %185 = vmatpush.msra.mxu0 %v49
    %186 = vmatpush.msra.mxu0 %v45
    %187 = vmatpush.msra.mxu0 %v41
    %188 = vmatmul.f32.gmra.mxu0 %v67
    %v189 = vpop.f32.mrf.mxu0
    %v190 = vadd.f32 %v59, %v189
    %191 = vmatmul.f32.gmra.mxu0 %v70
    %v192 = vpop.f32.mrf.mxu0
    %v193 = vadd.f32 %v59, %v192
    %194 = vmatmul.f32.gmra.mxu0 %v73
    %v195 = vpop.f32.mrf.mxu0
    %v196 = vadd.f32 %v59, %v195
    %197 = vmatmul.f32.gmra.mxu0 %v76
    %v198 = vpop.f32.mrf.mxu0
    %v199 = vadd.f32 %v59, %v198
    %200 = vmatmul.f32.gmra.mxu0 %v79
    %v201 = vpop.f32.mrf.mxu0
    %v202 = vadd.f32 %v59, %v201
    %203 = vmatmul.f32.gmra.mxu0 %v82
    %v204 = vpop.f32.mrf.mxu0
    %v205 = vadd.f32 %v59, %v204
    %206 = vmatmul.f32.gmra.mxu0 %v85
    %v207 = vpop.f32.mrf.mxu0
    %v208 = vadd.f32 %v59, %v207
    %209 = vmatmul.f32.gmra.mxu0 %v88
    %v210 = vpop.f32.mrf.mxu0
    %v211 = vadd.f32 %v59, %v210
    %212 = vdwg.mxu0
    %213 = vmatpush.msra.mxu0 0.0
    %214 = vmatpush.msra.mxu0 0.0
    %215 = vmatpush.msra.mxu0 0.0
    %216 = vmatpush.msra.mxu0 0.0
    %217 = vmatpush.msra.mxu0 0.0
    %218 = vmatpush.msra.mxu0 0.0
    %219 = vmatpush.msra.mxu0 0.0
    %220 = vmatpush.msra.mxu0 0.0
    %221 = vmatpush.msra.mxu0 0.0
    %222 = vmatpush.msra.mxu0 0.0
    %223 = vmatpush.msra.mxu0 0.0
    %224 = vmatpush.msra.mxu0 0.0
    %225 = vmatpush.msra.mxu0 %v54
    %226 = vmatpush.msra.mxu0 %v50
    %227 = vmatpush.msra.mxu0 %v46
    %228 = vmatpush.msra.mxu0 %v42
    %229 = vmatmul.f32.gmra.mxu0 %v67
    %v230 = vpop.f32.mrf.mxu0
    %v231 = vadd.f32 %v60, %v230
    %232 = vmatmul.f32.gmra.mxu0 %v70
    %v233 = vpop.f32.mrf.mxu0
    %v234 = vadd.f32 %v60, %v233
    %235 = vmatmul.f32.gmra.mxu0 %v73
    %v236 = vpop.f32.mrf.mxu0
    %v237 = vadd.f32 %v60, %v236
    %238 = vmatmul.f32.gmra.mxu0 %v76
    %v239 = vpop.f32.mrf.mxu0
    %v240 = vadd.f32 %v60, %v239
    %241 = vmatmul.f32.gmra.mxu0 %v79
    %v242 = vpop.f32.mrf.mxu0
    %v243 = vadd.f32 %v60, %v242
    %244 = vmatmul.f32.gmra.mxu0 %v82
    %v245 = vpop.f32.mrf.mxu0
    %v246 = vadd.f32 %v60, %v245
    %247 = vmatmul.f32.gmra.mxu0 %v85
    %v248 = vpop.f32.mrf.mxu0
    %v249 = vadd.f32 %v60, %v248
    %250 = vmatmul.f32.gmra.mxu0 %v88
    %v251 = vpop.f32.mrf.mxu0
    %v252 = vadd.f32 %v60, %v251
    %253 = vdwg.mxu0
    %254 = vst [vmem:[#allocation5] sm:$0xff] %v108
    %255 = vst [vmem:[#allocation5 + $0x8] sm:$0xff] %v149
    %256 = vst [vmem:[#allocation5 + $0x10] sm:$0xff] %v190
    %257 = vst [vmem:[#allocation5 + $0x18] sm:$0xff] %v231
    %258 = vst [vmem:[#allocation5 + $0x20] sm:$0xff] %v111
    %259 = vst [vmem:[#allocation5 + $0x28] sm:$0xff] %v152
    %260 = vst [vmem:[#allocation5 + $0x30] sm:$0xff] %v193
    %261 = vst [vmem:[#allocation5 + $0x38] sm:$0xff] %v234
    %262 = vst [vmem:[#allocation5 + $0x40] sm:$0xff] %v114
    %263 = vst [vmem:[#allocation5 + $0x48] sm:$0xff] %v155
    %264 = vst [vmem:[#allocation5 + $0x50] sm:$0xff] %v196
    %265 = vst [vmem:[#allocation5 + $0x58] sm:$0xff] %v237
    %266 = vst [vmem:[#allocation5 + $0x60] sm:$0xff] %v117
    %267 = vst [vmem:[#allocation5 + $0x68] sm:$0xff] %v158
    %268 = vst [vmem:[#allocation5 + $0x70] sm:$0xff] %v199
    %269 = vst [vmem:[#allocation5 + $0x78] sm:$0xff] %v240
    %270 = vst [vmem:[#allocation5 + $0x80] sm:$0xff] %v120
    %271 = vst [vmem:[#allocation5 + $0x88] sm:$0xff] %v161
    %272 = vst [vmem:[#allocation5 + $0x90] sm:$0xff] %v202
    %273 = vst [vmem:[#allocation5 + $0x98] sm:$0xff] %v243
    %274 = vst [vmem:[#allocation5 + $0xa0] sm:$0xff] %v123
    %275 = vst [vmem:[#allocation5 + $0xa8] sm:$0xff] %v164
    %276 = vst [vmem:[#allocation5 + $0xb0] sm:$0xff] %v205
    %277 = vst [vmem:[#allocation5 + $0xb8] sm:$0xff] %v246
    %278 = vst [vmem:[#allocation5 + $0xc0] sm:$0xff] %v126
    %279 = vst [vmem:[#allocation5 + $0xc8] sm:$0xff] %v167
    %280 = vst [vmem:[#allocation5 + $0xd0] sm:$0xff] %v208
    %281 = vst [vmem:[#allocation5 + $0xd8] sm:$0xff] %v249
    %282 = vst [vmem:[#allocation5 + $0xe0] sm:$0xff] %v129
    %283 = vst [vmem:[#allocation5 + $0xe8] sm:$0xff] %v170
    %284 = vst [vmem:[#allocation5 + $0xf0] sm:$0xff] %v211
    %285 = vst [vmem:[#allocation5 + $0xf8] sm:$0xff] %v252
    // Predicated region
    $region18: #{tpu_custom_call.1} parent=1 // pred_check
      _
    $region19: #{tpu_custom_call.1} parent=1 // pred_check_branch
      %287 = sbr.rel (0) target = $region21
    $region20: #{tpu_custom_call.1} parent=1 // pred_region
      %289 = vsyncadd [#allocation4], 0
      %s290 = sshll.u32 [#allocation5], 4
      %s291 = int_to_ptr.vmem [resolvable:$true] %s290
      %s292 = sshll.u32 %s3, 4
      %s293 = int_to_ptr.hbm [resolvable:$true] %s292
      %298 = dma.vmem_to_hbm [thread:$0]  %s291, 4096, %s293, [#allocation4], 512, 512, 32
    $region21: #{tpu_custom_call.1} parent=1 // pred_fallthru
      _
    // Predicated region
    $region22: #{tpu_custom_call.1} parent=1 // pred_check
      _
    $region23: #{tpu_custom_call.1} parent=1 // pred_check_branch
      %300 = sbr.rel (0) target = $region25
    $region24: #{tpu_custom_call.1} parent=1 // pred_region
      %302 = dma.done [#allocation4], 4096
    $region25: #{tpu_custom_call.1} parent=1 // pred_fallthru
      _
    %303 = vsyncpa [#allocation3], 1
    %304 = vsyncpa [#allocation4], 1

</llo_original>
